<compile_context>
chip_gen: v6e
topology: v6e:2x2x1
jax: 0.10.0
libtpu: 0.0.40
codegen_flags: <defaults>
</compile_context>

<pallas_src>
import functools
import math

import jax
import jax.numpy as jnp
from jax import lax
from jax.experimental import pallas as pl
from jax.experimental.pallas import tpu as pltpu

_LANES = 128
_SUBLANES = 8


def _round_up(v, m):
    return ((v + m - 1) // m) * m


def _atan2_f32(b, a):
    """float32 atan2(b, a) from basic VPU ops (one divide per element).

    Quadrant reduction + Cephes atanf minimax polynomial; the fold of
    t in (tan(pi/8), 1] onto [-tan(pi/8), 0] is merged into the ratio so only
    a single division is needed.
    """
    abs_a = jnp.abs(a)
    abs_b = jnp.abs(b)
    mx = jnp.maximum(abs_a, abs_b)
    mn = jnp.minimum(abs_a, abs_b)
    mx_safe = jnp.where(mx > 0.0, mx, 1.0)

    tan_pi_8 = 0.4142135623730951
    big = mn > tan_pi_8 * mx
    num = jnp.where(big, mn - mx, mn)          # (t - 1) folded into numerator
    den = jnp.where(big, mn + mx, mx_safe)     # (t + 1) folded into denominator
    xr = num / den                             # |xr| <= tan(pi/8)
    base = jnp.where(big, math.pi / 4.0, 0.0)

    zz = xr * xr
    p = 8.05374449538e-2
    p = p * zz - 1.38776856032e-1
    p = p * zz + 1.99777106478e-1
    p = p * zz - 3.33329491539e-1
    r = base + (xr + xr * zz * p)              # atan(min/max)

    r = jnp.where(abs_b > abs_a, math.pi / 2.0 - r, r)   # -> atan(|b| / |a|)
    r = jnp.where(a < 0.0, math.pi - r, r)                # quadrants II / III
    r = jnp.where(b < 0.0, -r, r)                         # lower half plane
    return r


def _angle_loss_block_kernel(x_ref, y_ref, o_ref, *, rows, block_rows):
    """One independent grid step: (block_rows, 128) elements -> (8,128) partial."""
    i = pl.program_id(0)

    x = x_ref[...]          # (block_rows, 128) f32
    y0 = y_ref[0]           # (block_rows, 128) f32
    y1 = y_ref[1]           # (block_rows, 128) f32

    theta = _atan2_f32(y1, y0)
    d = theta - x
    d2 = d * d

    # Mask rows of the (possibly partial) last block; sub-128 tail elements
    # were padded with neutral values (atan2(0,1) - 0 = 0) in the wrapper.
    valid_rows = rows - i * block_rows
    r_iota = lax.broadcasted_iota(jnp.int32, (block_rows, 1), 0)
    d2 = jnp.where(r_iota < valid_rows, d2, 0.0)

    # (block_rows, 128) -> (8, 128) partial: pure vreg add tree, no per-step
    # cross-sublane reduce.
    psum = jnp.sum(d2.reshape(block_rows // _SUBLANES, _SUBLANES, _LANES), axis=0)
    o_ref[0] = psum


def angle_loss(x, y, ratio=None, *, block_rows=2048):
    """Pallas TPU equivalent of AngleLoss.forward(x, y).

    x: (N,) float — angles.  y: (N, 2) float — angle = atan2(y[:,1], y[:,0]).
    `ratio` is accepted for API parity but, like the PyTorch module, unused.
    """
    del ratio  # unused in the reference forward as well
    n = x.shape[0]
    assert y.shape == (n, 2)

    x = x.reshape(n).astype(jnp.float32)
    y = y.astype(jnp.float32)

    # Pad only up to the next (8*128)-element boundary with neutral values so
    # padded elements contribute exactly 0; for aligned N this is a no-op.
    tile = _SUBLANES * _LANES
    n_pad = _round_up(n, tile)
    pad = n_pad - n
    if pad:
        x = jnp.concatenate([x, jnp.zeros((pad,), jnp.float32)])
        y_pad = jnp.broadcast_to(jnp.array([1.0, 0.0], jnp.float32), (pad, 2))
        y = jnp.concatenate([y, y_pad], axis=0)

    rows = n_pad // _LANES                       # multiple of 8
    block_rows = max(_SUBLANES, min(block_rows, rows))
    block_rows = _round_up(block_rows, _SUBLANES)
    n_blocks = pl.cdiv(rows, block_rows)

    x2 = x.reshape(rows, _LANES)
    # Single-array y feed: free reshape + ONE transpose pass (instead of two
    # strided y[:,0] / y[:,1] slice passes).
    y_t = y.reshape(rows, _LANES, 2).transpose(2, 0, 1)     # (2, rows, 128)

    kernel = functools.partial(_angle_loss_block_kernel,
                               rows=rows, block_rows=block_rows)

    partials = pl.pallas_call(
        kernel,
        out_shape=jax.ShapeDtypeStruct((n_blocks, _SUBLANES, _LANES), jnp.float32),
        grid=(n_blocks,),
        in_specs=[
            pl.BlockSpec((block_rows, _LANES), lambda i: (i, 0)),
            pl.BlockSpec((2, block_rows, _LANES), lambda i: (0, i, 0)),
        ],
        out_specs=pl.BlockSpec((1, _SUBLANES, _LANES), lambda i: (i, 0, 0)),
        compiler_params=pltpu.CompilerParams(
            # Every step writes its own partial block -> fully parallel grid
            # axis; on v7x this shards the blocks across both TensorCores.
            dimension_semantics=("parallel",),
            vmem_limit_bytes=32 * 1024 * 1024,
        ),
    )(x2, y_t)

    # Tiny final reduce over (n_blocks, 8, 128) partials + the 1/N mean scale.
    return jnp.sum(partials) / n


def angle_loss_ref(x, y):
    return jnp.mean(jnp.square(jnp.arctan2(y[:, 1], y[:, 0]) - x))


if __name__ == "__main__":
    # Small shapes consistent with the module: x (N,), y (N, 2).
    N = 1000  # deliberately not a multiple of 128 to exercise the tail path
    key = jax.random.PRNGKey(0)
    kx, ky = jax.random.split(key)
    x = jax.random.normal(kx, (N,), jnp.float32)
    y = jax.random.normal(ky, (N, 2), jnp.float32)

    loss = angle_loss(x, y, ratio=1.0)
    loss = jax.block_until_ready(loss)

    ref = angle_loss_ref(x, y)
    assert loss.shape == ()
    assert jnp.allclose(loss, ref, atol=1e-4, rtol=1e-4), (loss, ref)

    print("KERNEL_OK")
</pallas_src>

<mosaic_0001>
module attributes {stable_mosaic.version = 11 : i64} {
  func.func @_angle_loss_block_kernel(%arg0: i32, %arg1: memref<8x128xf32, #tpu.memory_space<vmem>>, %arg2: memref<2x8x128xf32, #tpu.memory_space<vmem>>, %arg3: memref<1x8x128xf32, #tpu.memory_space<vmem>>) attributes {dimension_semantics = [#tpu.dimension_semantics<parallel>], iteration_bounds = array<i64: 1>, scalar_prefetch = 0 : i64, scratch_operands = 0 : i64, tpu.core_type = #tpu.core_type<tc>, window_params = [{transform_indices = @transform_0, window_bounds = array<i64: 8, 128>}, {transform_indices = @transform_1, window_bounds = array<i64: 2, 8, 128>}, {transform_indices = @transform_2, window_bounds = array<i64: 1, 8, 128>}]} {
    %c0 = arith.constant 0 : index
    %c0_0 = arith.constant 0 : index
    %0 = vector.load %arg1[%c0, %c0_0] : memref<8x128xf32, #tpu.memory_space<vmem>>, vector<8x128xf32>
    %c0_1 = arith.constant 0 : index
    %c0_2 = arith.constant 0 : index
    %c0_3 = arith.constant 0 : index
    %1 = vector.load %arg2[%c0_1, %c0_2, %c0_3] : memref<2x8x128xf32, #tpu.memory_space<vmem>>, vector<1x8x128xf32>
    %2 = vector.shape_cast %1 : vector<1x8x128xf32> to vector<8x128xf32>
    %c1 = arith.constant 1 : index
    %c0_4 = arith.constant 0 : index
    %c0_5 = arith.constant 0 : index
    %3 = vector.load %arg2[%c1, %c0_4, %c0_5] : memref<2x8x128xf32, #tpu.memory_space<vmem>>, vector<1x8x128xf32>
    %4 = vector.shape_cast %3 : vector<1x8x128xf32> to vector<8x128xf32>
    %5 = math.absf %2 : vector<8x128xf32>
    %6 = math.absf %4 : vector<8x128xf32>
    %7 = arith.maximumf %5, %6 : vector<8x128xf32>
    %8 = arith.minimumf %5, %6 : vector<8x128xf32>
    %cst = arith.constant 0.000000e+00 : f32
    %9 = vector.broadcast %cst : f32 to vector<8x128xf32>
    %10 = arith.cmpf ogt, %7, %9 : vector<8x128xf32>
    %cst_6 = arith.constant 1.000000e+00 : f32
    %11 = vector.broadcast %cst_6 : f32 to vector<8x128xf32>
    %12 = arith.select %10, %7, %11 : vector<8x128xi1>, vector<8x128xf32>
    %cst_7 = arith.constant 0.414213568 : f32
    %13 = vector.broadcast %cst_7 : f32 to vector<8x128xf32>
    %14 = arith.mulf %13, %7 : vector<8x128xf32>
    %15 = arith.cmpf ogt, %8, %14 : vector<8x128xf32>
    %16 = arith.subf %8, %7 : vector<8x128xf32>
    %17 = arith.select %15, %16, %8 : vector<8x128xi1>, vector<8x128xf32>
    %18 = arith.addf %8, %7 : vector<8x128xf32>
    %19 = arith.select %15, %18, %12 : vector<8x128xi1>, vector<8x128xf32>
    %20 = arith.divf %17, %19 : vector<8x128xf32>
    %cst_8 = arith.constant 0.785398185 : f32
    %cst_9 = arith.constant 0.000000e+00 : f32
    %21 = vector.broadcast %cst_8 : f32 to vector<8x128xf32>
    %22 = vector.broadcast %cst_9 : f32 to vector<8x128xf32>
    %23 = arith.select %15, %21, %22 : vector<8x128xi1>, vector<8x128xf32>
    %24 = arith.mulf %20, %20 : vector<8x128xf32>
    %cst_10 = arith.constant 0.0805374458 : f32
    %25 = vector.broadcast %cst_10 : f32 to vector<8x128xf32>
    %26 = arith.mulf %25, %24 : vector<8x128xf32>
    %cst_11 = arith.constant 0.138776854 : f32
    %27 = vector.broadcast %cst_11 : f32 to vector<8x128xf32>
    %28 = arith.subf %26, %27 : vector<8x128xf32>
    %29 = arith.mulf %28, %24 : vector<8x128xf32>
    %cst_12 = arith.constant 0.199777111 : f32
    %30 = vector.broadcast %cst_12 : f32 to vector<8x128xf32>
    %31 = arith.addf %29, %30 : vector<8x128xf32>
    %32 = arith.mulf %31, %24 : vector<8x128xf32>
    %cst_13 = arith.constant 0.333329499 : f32
    %33 = vector.broadcast %cst_13 : f32 to vector<8x128xf32>
    %34 = arith.subf %32, %33 : vector<8x128xf32>
    %35 = arith.mulf %20, %24 : vector<8x128xf32>
    %36 = arith.mulf %35, %34 : vector<8x128xf32>
    %37 = arith.addf %20, %36 : vector<8x128xf32>
    %38 = arith.addf %23, %37 : vector<8x128xf32>
    %39 = arith.cmpf ogt, %6, %5 : vector<8x128xf32>
    %cst_14 = arith.constant 1.57079637 : f32
    %40 = vector.broadcast %cst_14 : f32 to vector<8x128xf32>
    %41 = arith.subf %40, %38 : vector<8x128xf32>
    %42 = arith.select %39, %41, %38 : vector<8x128xi1>, vector<8x128xf32>
    %cst_15 = arith.constant 0.000000e+00 : f32
    %43 = vector.broadcast %cst_15 : f32 to vector<8x128xf32>
    %44 = arith.cmpf olt, %2, %43 : vector<8x128xf32>
    %cst_16 = arith.constant 3.14159274 : f32
    %45 = vector.broadcast %cst_16 : f32 to vector<8x128xf32>
    %46 = arith.subf %45, %42 : vector<8x128xf32>
    %47 = arith.select %44, %46, %42 : vector<8x128xi1>, vector<8x128xf32>
    %cst_17 = arith.constant 0.000000e+00 : f32
    %48 = vector.broadcast %cst_17 : f32 to vector<8x128xf32>
    %49 = arith.cmpf olt, %4, %48 : vector<8x128xf32>
    %cst_18 = arith.constant 0.000000e+00 : f32
    %50 = vector.broadcast %cst_18 : f32 to vector<8x128xf32>
    %51 = arith.subf %50, %47 : vector<8x128xf32>
    %52 = arith.select %49, %51, %47 : vector<8x128xi1>, vector<8x128xf32>
    %53 = arith.subf %52, %0 : vector<8x128xf32>
    %54 = arith.mulf %53, %53 : vector<8x128xf32>
    %c8_i32 = arith.constant 8 : i32
    %55 = arith.muli %arg0, %c8_i32 : i32
    %c8_i32_19 = arith.constant 8 : i32
    %56 = arith.subi %c8_i32_19, %55 : i32
    %57 = tpu.iota {dimensions = array<i32: 0>} : vector<8x1xi32>
    %58 = vector.broadcast %56 : i32 to vector<8x1xi32>
    %59 = arith.cmpi slt, %57, %58 : vector<8x1xi32>
    %cst_20 = arith.constant 0.000000e+00 : f32
    %60 = vector.shape_cast %59 : vector<8x1xi1> to vector<8x1xi1>
    %61 = vector.broadcast %60 : vector<8x1xi1> to vector<8x128xi1>
    %62 = vector.broadcast %cst_20 : f32 to vector<8x128xf32>
    %63 = arith.select %61, %54, %62 : vector<8x128xi1>, vector<8x128xf32>
    %64 = vector.shape_cast %63 : vector<8x128xf32> to vector<1x8x128xf32>
    %cst_21 = arith.constant dense<0.000000e+00> : vector<8x128xf32>
    %65 = vector.multi_reduction <add>, %64, %cst_21 [0] : vector<1x8x128xf32> to vector<8x128xf32>
    %c0_22 = arith.constant 0 : index
    %c0_23 = arith.constant 0 : index
    %c0_24 = arith.constant 0 : index
    %66 = vector.load %arg3[%c0_22, %c0_23, %c0_24] : memref<1x8x128xf32, #tpu.memory_space<vmem>>, vector<1x8x128xf32>
    %67 = vector.shape_cast %66 : vector<1x8x128xf32> to vector<8x128xf32>
    %68 = vector.shape_cast %65 : vector<8x128xf32> to vector<1x8x128xf32>
    tpu.vector_store %arg3[%c0_22, %c0_23, %c0_24], %68 {strides = array<i32>} : memref<1x8x128xf32, #tpu.memory_space<vmem>>, vector<1x8x128xf32>,
    return
  }
  func.func @transform_0(%arg0: i32) -> (i32, i32) {
    %c0_i32 = arith.constant 0 : i32
    %c0_i32_0 = arith.constant 0 : i32
    return %arg0, %c0_i32 : i32, i32
  }
  func.func @transform_1(%arg0: i32) -> (i32, i32, i32) {
    %c0_i32 = arith.constant 0 : i32
    %c0_i32_0 = arith.constant 0 : i32
    %c0_i32_1 = arith.constant 0 : i32
    return %c0_i32, %arg0, %c0_i32_0 : i32, i32, i32
  }
  func.func @transform_2(%arg0: i32) -> (i32, i32, i32) {
    %c0_i32 = arith.constant 0 : i32
    %c0_i32_0 = arith.constant 0 : i32
    %c0_i32_1 = arith.constant 0 : i32
    return %arg0, %c0_i32, %c0_i32_0 : i32, i32, i32
  }
}

</mosaic_0001>

<llo_original>
// kernel: tpu_custom_call.1
$region0: #{tpu_custom_call.1}
  #allocation0 [shape = 'u32[]', space=smem, size = 0x4, offset = 0x4, fixed_abs, tag = 'smem constant byte address 0x4 - core index']
  #allocation1 [shape = 'u32[144,128]{1,0:T(1,128)}', space=vmem, size = 0x12000, scoped, tag = 'internal scratch']
  %s0 = inlined_call_operand.hbm [shape: f32[8,128], index: 0, kind: input, shape index: {}]
  %s1 = inlined_call_operand.hbm [shape: f32[2,8,128], index: 1, kind: input, shape index: {}]
  %s2 = inlined_call_operand.hbm [shape: f32[1,8,128], index: 2, kind: output, shape index: {}]
  %s3 = sld [smem:[#allocation0]]
  $region26: #{tpu_custom_call.1} parent=0
    _
  %s5 = ssub.s32 1, %s3
  %s6 = scalar_select 0, %s5, %s3
  $region1: #{tpu_custom_call.1} parent=0
    #allocation2 [shape = 'u8[4096]{0}', space=vmem, size = 0x1000, scoped, tag = 'input window, operand 0, single buffered']
    #allocation3 [shape = 's32[1]{0}', space=sflag, size = 0x4, scoped, tag = 'scoped memory for tpu_custom_call.1']
    #allocation4 [shape = 's32[1]{0}', space=sflag, size = 0x4, scoped, tag = 'scoped memory for tpu_custom_call.1']
    #allocation5 [shape = 'u8[8192]{0}', space=vmem, size = 0x2000, scoped, tag = 'input window, operand 1, single buffered']
    #allocation6 [shape = 's32[1]{0}', space=sflag, size = 0x4, scoped, tag = 'scoped memory for tpu_custom_call.1']
    #allocation7 [shape = 'u8[4096]{0}', space=vmem, size = 0x1000, scoped, tag = 'output window, operand 0, single buffered']
    %7 = vsyncpa [#allocation3], 0
    %8 = vsyncpa [#allocation6], 0
    %9 = vsyncpa [#allocation4], 0
    // Predicated region
    $region2: #{tpu_custom_call.1} parent=1 // pred_check
      _
    $region3: #{tpu_custom_call.1} parent=1 // pred_check_branch
      %11 = sbr.rel (0) target = $region5
    $region4: #{tpu_custom_call.1} parent=1 // pred_region
      %s13 = ssub.s32 128, 128
      %14 = vsyncadd [#allocation3], %s13
      %s16 = sshll.u32 [#allocation2], 4
      %s17 = int_to_ptr.vmem [resolvable:$true] %s16
      %19 = dma.hbm_to_vmem [thread:$0]  %s0, 128, %s17, [#allocation3]
    $region5: #{tpu_custom_call.1} parent=1 // pred_fallthru
      _
    // Predicated region
    $region6: #{tpu_custom_call.1} parent=1 // pred_check
      _
    $region7: #{tpu_custom_call.1} parent=1 // pred_check_branch
      %21 = sbr.rel (0) target = $region9
    $region8: #{tpu_custom_call.1} parent=1 // pred_region
      %s23 = ssub.s32 256, 256
      %24 = vsyncadd [#allocation6], %s23
      %s25 = sshll.u32 [#allocation5], 4
      %s26 = int_to_ptr.vmem [resolvable:$true] %s25
      %31 = dma.hbm_to_vmem [thread:$0]  %s1, 256, %s26, [#allocation6], 128, 128, 8
    $region9: #{tpu_custom_call.1} parent=1 // pred_fallthru
      _
    // Predicated region
    $region10: #{tpu_custom_call.1} parent=1 // pred_check
      _
    $region11: #{tpu_custom_call.1} parent=1 // pred_check_branch
      %33 = sbr.rel (0) target = $region13
    $region12: #{tpu_custom_call.1} parent=1 // pred_region
      %34 = dma.done [#allocation3], 128
    $region13: #{tpu_custom_call.1} parent=1 // pred_fallthru
      _
    // Predicated region
    $region14: #{tpu_custom_call.1} parent=1 // pred_check
      _
    $region15: #{tpu_custom_call.1} parent=1 // pred_check_branch
      %36 = sbr.rel (0) target = $region17
    $region16: #{tpu_custom_call.1} parent=1 // pred_region
      %37 = dma.done [#allocation6], 256
    $region17: #{tpu_custom_call.1} parent=1 // pred_fallthru
      _
    %v38 = vld [vmem:[#allocation2] sm:$0xff]
    %v39 = vld [vmem:[#allocation5] sm:$0xff]
    %s40 = scalar_lea.vmem [#allocation5], 8
    %v41 = vld [vmem:[%s40] sm:$0xff]
    %v42 = vand.u32 2147483647, %v39
    %v43 = vand.u32 2147483647, %v41
    %v44 = vmax.f32 %v42, %v43
    %v45 = vmin.f32 %v42, %v43
    %vm46 = vcmp.gt.f32.partialorder %v44, 0.0
    %v47 = vsel %vm46, %v44, 1.0
    %v48 = vmul.f32 %v44, 0.41421357
    %vm49 = vcmp.gt.f32.partialorder %v45, %v48
    %v50 = vsub.f32 %v45, %v44
    %v51 = vsel %vm49, %v50, %v45
    %v52 = vadd.f32 %v45, %v44
    %v53 = vsel %vm49, %v52, %v47
    %v54 = vrcp.pop %v53
    %v55 = vmul.f32 %v51, %v54
    %v56 = vsel %vm49, 0.7853982, 0.0
    %v57 = vmul.f32 %v55, %v55
    %v58 = vmul.f32 %v57, 0.080537446
    %v59 = vsub.f32 %v58, 0.13877685
    %v60 = vmul.f32 %v59, %v57
    %v61 = vadd.f32 %v60, 0.19977711
    %v62 = vmul.f32 %v61, %v57
    %v63 = vsub.f32 %v62, 0.3333295
    %v64 = vmul.f32 %v55, %v57
    %v65 = vmul.f32 %v64, %v63
    %v66 = vadd.f32 %v55, %v65
    %v67 = vadd.f32 %v56, %v66
    %vm68 = vcmp.gt.f32.partialorder %v43, %v42
    %v69 = vsub.f32 1.5707964, %v67
    %v70 = vsel %vm68, %v69, %v67
    %vm71 = vcmp.lt.f32.partialorder %v39, 0.0
    %v72 = vsub.f32 3.1415927, %v70
    %v73 = vsel %vm71, %v72, %v70
    %vm74 = vcmp.lt.f32.partialorder %v41, 0.0
    %v75 = vsub.f32 0.0, %v73
    %v76 = vsel %vm74, %v75, %v73
    %v77 = vsub.f32 %v76, %v38
    %v78 = vmul.f32 %v77, %v77
    %s79 = smul.u32 0, 8
    %s80 = ssub.s32 8, %s79
    %v81 = vlaneseq
    %v82 = vshrl.u32 %v81, 7
    %v83 = vstv %s80
    %vm84 = vcmp.lt.s32.totalorder %v82, %v83
    %v85 = vsel %vm84, 1, 0
    %vm86 = vcmp.eq.s32.totalorder %v85, 1
    %v87 = vsel %vm86, %v78, 0.0
    %v88 = vadd.f32 %v87, 0.0
    %89 = vst [vmem:[#allocation7] sm:$0xff] %v88
    // Predicated region
    $region18: #{tpu_custom_call.1} parent=1 // pred_check
      _
    $region19: #{tpu_custom_call.1} parent=1 // pred_check_branch
      %91 = sbr.rel (0) target = $region21
    $region20: #{tpu_custom_call.1} parent=1 // pred_region
      %s93 = ssub.s32 128, 128
      %94 = vsyncadd [#allocation4], %s93
      %s96 = sshll.u32 [#allocation7], 4
      %s97 = int_to_ptr.vmem [resolvable:$true] %s96
      %99 = dma.vmem_to_hbm [thread:$0]  %s97, 128, %s2, [#allocation4]
    $region21: #{tpu_custom_call.1} parent=1 // pred_fallthru
      _
    // Predicated region
    $region22: #{tpu_custom_call.1} parent=1 // pred_check
      _
    $region23: #{tpu_custom_call.1} parent=1 // pred_check_branch
      %101 = sbr.rel (0) target = $region25
    $region24: #{tpu_custom_call.1} parent=1 // pred_region
      %102 = dma.done [#allocation4], 128
    $region25: #{tpu_custom_call.1} parent=1 // pred_fallthru
      _
    %103 = vsyncpa [#allocation3], 1
    %104 = vsyncpa [#allocation6], 1
    %105 = vsyncpa [#allocation4], 1

</llo_original>
